<compile_context>
chip_gen: v7x
topology: tpu7x:2x2x1
jax: 0.10.0
libtpu: 0.0.40
codegen_flags: <defaults>
</compile_context>

<pallas_src>
import functools

import jax
import jax.numpy as jnp
from jax.experimental import pallas as pl
from jax.experimental.pallas import tpu as pltpu


C_PAD = 128      # lane-dense channel padding (128-lane vreg width)
MAX_TILE = 512   # adjacency tile edge cap (perf review: 256-512)


def _round_up(v, m):
    return ((v + m - 1) // m) * m


def _choose_tile(n, requested=None):
    """Largest tile (multiple of 128, <= MAX_TILE) dividing the 128-padded
    node count, so small graphs are not over-padded by a big tile."""
    n128 = max(128, _round_up(n, 128))
    if requested is not None:
        assert requested % 128 == 0
        tile = requested
    else:
        tile = 128
        t = min(MAX_TILE, n128)
        while t >= 128:
            if n128 % t == 0:
                tile = t
                break
            t -= 128
    n_pad = _round_up(n128, tile)
    return tile, n_pad


# ----------------------------------------------------------------------------
# Pallas kernel: one GraphConv layer   out = (A @ H) W_rel + H W_root + b
# ----------------------------------------------------------------------------
def _graph_conv_kernel(adj_ref, h_ref, w_ref, b_ref, o_ref, acc_ref,
                       *, tm: int, tk: int, apply_relu: bool):
    i = pl.program_id(0)     # output row tile        (parallel)
    k = pl.program_id(1)     # neighbour / contraction tile (innermost)
    nk = pl.num_programs(1)

    # zero the aggregation half of the accumulator at the start of the k loop
    @pl.when(k == 0)
    def _():
        acc_ref[:, :C_PAD] = jnp.zeros((tm, C_PAD), jnp.float32)

    # ---- neighbour sum-aggregation: acc[:, :C] += A[i, k] @ H[k] -----------
    # A is stored bf16 (exact small-integer edge counts); the H tile is cast
    # to bf16 so the dominant matmul is a single-pass bf16 MXU op with f32
    # accumulation (a multi-pass f32xf32 dot would make v5e/v7x MXU-bound).
    k_start = pl.multiple_of(k * tk, tk)
    h_k = h_ref[pl.ds(k_start, tk), :].astype(jnp.bfloat16)
    acc_ref[:, :C_PAD] += jnp.dot(adj_ref[...], h_k,
                                  preferred_element_type=jnp.float32)

    # ---- epilogue only at the last contraction step ------------------------
    @pl.when(k == nk - 1)
    def _():
        i_start = pl.multiple_of(i * tm, tm)
        # root (self) features go in the second half of acc so lin_rel and
        # lin_root run as a single K=2*C_PAD MXU pass (no concatenate copy).
        acc_ref[:, C_PAD:] = h_ref[pl.ds(i_start, tm), :]
        out = jnp.dot(acc_ref[...], w_ref[...],
                      preferred_element_type=jnp.float32) + b_ref[...]
        if apply_relu:                      # static per-layer branch
            out = jnp.maximum(out, 0.0)
        o_ref[...] = out.astype(o_ref.dtype)


def _graph_conv_layer(adj, h, w, b, *, tile, apply_relu):
    n_pad = h.shape[0]
    grid = (n_pad // tile, n_pad // tile)

    # explicit VMEM budget: A tiles (x2 bufs) + resident H (x2 bufs) + out
    # tiles (x2) + weights/bias (x2) + accumulator scratch, plus headroom.
    budget = (2 * tile * tile * 2                        # A tiles, bf16
              + 2 * n_pad * C_PAD * 4                    # resident features
              + 2 * tile * C_PAD * 4                     # output tiles
              + 2 * (2 * C_PAD * C_PAD * 4 + C_PAD * 4)  # W + b
              + tile * 2 * C_PAD * 4)                    # accumulator
    vmem_limit = int(min(max(budget + (8 << 20), 32 << 20), 128 << 20))

    kernel = functools.partial(_graph_conv_kernel, tm=tile, tk=tile,
                               apply_relu=apply_relu)
    return pl.pallas_call(
        kernel,
        out_shape=jax.ShapeDtypeStruct((n_pad, C_PAD), jnp.float32),
        grid=grid,
        in_specs=[
            # adjacency streamed in (tile, tile) bf16 blocks, software-pipelined
            pl.BlockSpec((tile, tile), lambda i, k: (i, k)),
            # node features: resident in VMEM for the whole call
            pl.BlockSpec((n_pad, C_PAD), lambda i, k: (0, 0)),
            # fused [W_rel; W_root] and bias: resident across the whole grid
            pl.BlockSpec((2 * C_PAD, C_PAD), lambda i, k: (0, 0)),
            pl.BlockSpec((1, C_PAD), lambda i, k: (0, 0)),
        ],
        out_specs=pl.BlockSpec((tile, C_PAD), lambda i, k: (i, 0)),
        scratch_shapes=[pltpu.VMEM((tile, 2 * C_PAD), jnp.float32)],
        compiler_params=pltpu.CompilerParams(
            dimension_semantics=("parallel", "arbitrary"),
            vmem_limit_bytes=vmem_limit),
    )(adj, h, w, b)


# ----------------------------------------------------------------------------
# Wrapper
# ----------------------------------------------------------------------------
def _pad_to(a, rows, cols):
    return jnp.zeros((rows, cols), a.dtype).at[:a.shape[0], :a.shape[1]].set(a)


def build_adjacency(edge_index, n_pad):
    """Dense sum-aggregation adjacency A[dst, src] += 1, zero-padded to
    (n_pad, n_pad), stored bf16 (exact for edge multiplicities <= 256).
    Hoist / cache this for graphs reused across forward calls."""
    src, dst = edge_index[0], edge_index[1]
    adj = jnp.zeros((n_pad, n_pad), jnp.float32).at[dst, src].add(1.0)
    return adj.astype(jnp.bfloat16)


def _pack_weights(w_rel, w_root, b):
    ci, co = w_rel.shape
    assert ci <= C_PAD and co <= C_PAD
    w = jnp.zeros((2 * C_PAD, C_PAD), jnp.float32)
    w = w.at[:ci, :co].set(w_rel).at[C_PAD:C_PAD + ci, :co].set(w_root)
    b_pad = jnp.zeros((1, C_PAD), jnp.float32).at[:, :co].set(b)
    return w, b_pad


def gnn_forward(params, x, edge_index, *, tile=None, adj=None):
    """Forward pass of GNN(gnn_arch='graph_N', gnn_act='relu'): a stack of
    GraphConv layers with ReLU between layers (no activation on the last)."""
    n = x.shape[0]
    c_out = params[-1][0].shape[1]
    num_layers = len(params)
    tile, n_pad = _choose_tile(n, tile)

    if adj is None:
        adj = build_adjacency(edge_index, n_pad)

    h = _pad_to(x.astype(jnp.float32), n_pad, C_PAD)
    for li, (w_rel, w_root, b) in enumerate(params):
        w_f, b_f = _pack_weights(w_rel, w_root, b)
        h = _graph_conv_layer(adj, h, w_f, b_f, tile=tile,
                              apply_relu=(li < num_layers - 1))
    return h[:n, :c_out]


# ----------------------------------------------------------------------------
# Parameter init (mimics PyTorch Linear default init)
# ----------------------------------------------------------------------------
def init_gnn_params(key, in_channels, hidden_channels, out_channels,
                    num_layers=2):
    dims = ([in_channels] + [hidden_channels] * (num_layers - 1) +
            [out_channels])
    params = []
    for li in range(num_layers):
        c_in, c_out = dims[li], dims[li + 1]
        key, k1, k2, k3 = jax.random.split(key, 4)
        bound = 1.0 / jnp.sqrt(jnp.float32(c_in))
        w_rel = jax.random.uniform(k1, (c_in, c_out), jnp.float32, -bound, bound)
        w_root = jax.random.uniform(k2, (c_in, c_out), jnp.float32, -bound, bound)
        b = jax.random.uniform(k3, (1, c_out), jnp.float32, -bound, bound)
        params.append((w_rel, w_root, b))
    return params


# ----------------------------------------------------------------------------
# Plain-JAX reference (pure f32)
# ----------------------------------------------------------------------------
def gnn_forward_ref(params, x, edge_index):
    n = x.shape[0]
    src, dst = edge_index[0], edge_index[1]
    adj = jnp.zeros((n, n), jnp.float32).at[dst, src].add(1.0)
    h = x
    for li, (w_rel, w_root, b) in enumerate(params):
        out = (adj @ h) @ w_rel + h @ w_root + b
        if li < len(params) - 1:
            out = jnp.maximum(out, 0.0)
        h = out
    return h


if __name__ == "__main__":
    key = jax.random.PRNGKey(0)
    k_feat, k_edge, k_param = jax.random.split(key, 3)

    # small graph: 200 nodes (not a multiple of 128 -> exercises padding),
    # 800 directed edges; channels 16 -> 32 -> 16 as in the module defaults.
    num_nodes = 200
    num_edges = 800
    in_channels, hidden_channels, out_channels = 16, 32, 16

    x = jax.random.normal(k_feat, (num_nodes, in_channels), jnp.float32)
    edge_index = jax.random.randint(k_edge, (2, num_edges), 0, num_nodes,
                                    dtype=jnp.int32)

    params = init_gnn_params(k_param, in_channels, hidden_channels,
                             out_channels, num_layers=2)

    out = gnn_forward(params, x, edge_index)
    out = jax.block_until_ready(out)

    ref = gnn_forward_ref(params, x, edge_index)
    assert out.shape == (num_nodes, out_channels)
    # Tolerance accounts for the bf16 aggregation matmul (A exact in bf16,
    # H rounded to bf16, f32 accumulation) adopted per the perf review.
    assert jnp.allclose(out, ref, atol=3e-2, rtol=3e-2), "mismatch vs reference"

    print("KERNEL_OK")
</pallas_src>

<mosaic_0001>
module attributes {stable_mosaic.version = 11 : i64} {
  func.func @_graph_conv_kernel(%arg0: i32, %arg1: i32, %arg2: memref<256x256xbf16, #tpu.memory_space<vmem>>, %arg3: memref<256x128xf32, #tpu.memory_space<vmem>>, %arg4: memref<256x128xf32, #tpu.memory_space<vmem>>, %arg5: memref<1x128xf32, #tpu.memory_space<vmem>>, %arg6: memref<256x128xf32, #tpu.memory_space<vmem>>, %arg7: memref<256x256xf32, #tpu.memory_space<vmem>>) attributes {dimension_semantics = [#tpu.dimension_semantics<parallel>, #tpu.dimension_semantics<arbitrary>], iteration_bounds = array<i64: 1, 1>, scalar_prefetch = 0 : i64, scratch_operands = 1 : i64, tpu.core_type = #tpu.core_type<tc>, window_params = [{transform_indices = @transform_0, window_bounds = array<i64: 256, 256>}, {pipeline_mode = #tpu.pipeline_mode<synchronous>, transform_indices = @transform_1, window_bounds = array<i64: 256, 128>}, {pipeline_mode = #tpu.pipeline_mode<synchronous>, transform_indices = @transform_2, window_bounds = array<i64: 256, 128>}, {pipeline_mode = #tpu.pipeline_mode<synchronous>, transform_indices = @transform_3, window_bounds = array<i64: 1, 128>}, {transform_indices = @transform_4, window_bounds = array<i64: 256, 128>}]} {
    %c0_i32 = arith.constant 0 : i32
    %0 = arith.cmpi eq, %arg1, %c0_i32 : i32
    %1 = arith.extui %0 : i1 to i32
    %c0_i32_0 = arith.constant 0 : i32
    %2 = arith.cmpi ne, %1, %c0_i32_0 : i32
    scf.if %2 {
      %cst_9 = arith.constant 0.000000e+00 : f32
      %16 = vector.broadcast %cst_9 : f32 to vector<256x128xf32>
      %c0_10 = arith.constant 0 : index
      %c0_11 = arith.constant 0 : index
      %17 = vector.load %arg7[%c0_10, %c0_11] : memref<256x256xf32, #tpu.memory_space<vmem>>, vector<256x128xf32>
      tpu.vector_store %arg7[%c0_10, %c0_11], %16 {strides = array<i32>} : memref<256x256xf32, #tpu.memory_space<vmem>>, vector<256x128xf32>,
    } else {
    }
    %c256_i32 = arith.constant 256 : i32
    %3 = arith.muli %arg1, %c256_i32 : i32
    %4 = tpu.assume_multiple %3, 256 : i32
    %5 = arith.index_cast %4 : i32 to index
    %c0 = arith.constant 0 : index
    %6 = vector.load %arg3[%5, %c0] : memref<256x128xf32, #tpu.memory_space<vmem>>, vector<256x128xf32>
    %7 = arith.truncf %6 : vector<256x128xf32> to vector<256x128xbf16>
    %c0_1 = arith.constant 0 : index
    %c0_2 = arith.constant 0 : index
    %8 = vector.load %arg7[%c0_1, %c0_2] : memref<256x256xf32, #tpu.memory_space<vmem>>, vector<256x128xf32>
    %c0_3 = arith.constant 0 : index
    %c0_4 = arith.constant 0 : index
    %9 = vector.load %arg2[%c0_3, %c0_4] : memref<256x256xbf16, #tpu.memory_space<vmem>>, vector<256x256xbf16>
    %cst = arith.constant dense<0.000000e+00> : vector<256x128xf32>
    %10 = tpu.matmul %9, %7, %cst {dimension_numbers = #tpu.dot_dimension_numbers<[1], [0], [0], [1], [0, 0, 1, 1], [], []>} : vector<256x256xbf16>, vector<256x128xbf16>, vector<256x128xf32> -> vector<256x128xf32>
    %11 = arith.addf %8, %10 : vector<256x128xf32>
    %c0_5 = arith.constant 0 : index
    %c0_6 = arith.constant 0 : index
    %12 = vector.load %arg7[%c0_5, %c0_6] : memref<256x256xf32, #tpu.memory_space<vmem>>, vector<256x128xf32>
    tpu.vector_store %arg7[%c0_5, %c0_6], %11 {strides = array<i32>} : memref<256x256xf32, #tpu.memory_space<vmem>>, vector<256x128xf32>,
    %c0_i32_7 = arith.constant 0 : i32
    %13 = arith.cmpi eq, %arg1, %c0_i32_7 : i32
    %14 = arith.extui %13 : i1 to i32
    %c0_i32_8 = arith.constant 0 : i32
    %15 = arith.cmpi ne, %14, %c0_i32_8 : i32
    scf.if %15 {
      %c256_i32_9 = arith.constant 256 : i32
      %16 = arith.muli %arg0, %c256_i32_9 : i32
      %17 = tpu.assume_multiple %16, 256 : i32
      %18 = arith.index_cast %17 : i32 to index
      %c0_10 = arith.constant 0 : index
      %19 = vector.load %arg3[%18, %c0_10] : memref<256x128xf32, #tpu.memory_space<vmem>>, vector<256x128xf32>
      %c0_11 = arith.constant 0 : index
      %c128 = arith.constant 128 : index
      %20 = vector.load %arg7[%c0_11, %c128] : memref<256x256xf32, #tpu.memory_space<vmem>>, vector<256x128xf32>
      tpu.vector_store %arg7[%c0_11, %c128], %19 {strides = array<i32>} : memref<256x256xf32, #tpu.memory_space<vmem>>, vector<256x128xf32>,
      %c0_12 = arith.constant 0 : index
      %c0_13 = arith.constant 0 : index
      %21 = vector.load %arg7[%c0_12, %c0_13] : memref<256x256xf32, #tpu.memory_space<vmem>>, vector<256x256xf32>
      %c0_14 = arith.constant 0 : index
      %c0_15 = arith.constant 0 : index
      %22 = vector.load %arg4[%c0_14, %c0_15] : memref<256x128xf32, #tpu.memory_space<vmem>>, vector<256x128xf32>
      %cst_16 = arith.constant dense<0.000000e+00> : vector<256x128xf32>
      %23 = tpu.matmul %21, %22, %cst_16 {dimension_numbers = #tpu.dot_dimension_numbers<[1], [0], [0], [1], [0, 0, 1, 1], [], []>} : vector<256x256xf32>, vector<256x128xf32>, vector<256x128xf32> -> vector<256x128xf32>
      %c0_17 = arith.constant 0 : index
      %c0_18 = arith.constant 0 : index
      %24 = vector.load %arg5[%c0_17, %c0_18] : memref<1x128xf32, #tpu.memory_space<vmem>>, vector<1x128xf32>
      %25 = vector.broadcast %24 : vector<1x128xf32> to vector<256x128xf32>
      %26 = arith.addf %23, %25 : vector<256x128xf32>
      %cst_19 = arith.constant 0.000000e+00 : f32
      %27 = vector.broadcast %cst_19 : f32 to vector<256x128xf32>
      %28 = arith.maximumf %26, %27 : vector<256x128xf32>
      %c0_20 = arith.constant 0 : index
      %c0_21 = arith.constant 0 : index
      %29 = vector.load %arg6[%c0_20, %c0_21] : memref<256x128xf32, #tpu.memory_space<vmem>>, vector<256x128xf32>
      tpu.vector_store %arg6[%c0_20, %c0_21], %28 {strides = array<i32>} : memref<256x128xf32, #tpu.memory_space<vmem>>, vector<256x128xf32>,
    } else {
    }
    return
  }
  func.func @transform_0(%arg0: i32, %arg1: i32) -> (i32, i32) {
    %c0_i32 = arith.constant 0 : i32
    return %arg0, %arg1 : i32, i32
  }
  func.func @transform_1(%arg0: i32, %arg1: i32) -> (i32, i32) {
    %c0_i32 = arith.constant 0 : i32
    %c0_i32_0 = arith.constant 0 : i32
    %c0_i32_1 = arith.constant 0 : i32
    return %c0_i32, %c0_i32_0 : i32, i32
  }
  func.func @transform_2(%arg0: i32, %arg1: i32) -> (i32, i32) {
    %c0_i32 = arith.constant 0 : i32
    %c0_i32_0 = arith.constant 0 : i32
    %c0_i32_1 = arith.constant 0 : i32
    return %c0_i32, %c0_i32_0 : i32, i32
  }
  func.func @transform_3(%arg0: i32, %arg1: i32) -> (i32, i32) {
    %c0_i32 = arith.constant 0 : i32
    %c0_i32_0 = arith.constant 0 : i32
    %c0_i32_1 = arith.constant 0 : i32
    return %c0_i32, %c0_i32_0 : i32, i32
  }
  func.func @transform_4(%arg0: i32, %arg1: i32) -> (i32, i32) {
    %c0_i32 = arith.constant 0 : i32
    %c0_i32_0 = arith.constant 0 : i32
    return %arg0, %c0_i32 : i32, i32
  }
}

</mosaic_0001>

<llo_original>
// kernel: tpu_custom_call.1
$region0: #{tpu_custom_call.1}
  #allocation0 [shape = 'u32[]', space=smem, size = 0x4, offset = 0x4, fixed_abs, tag = 'smem constant byte address 0x4 - core index']
  #allocation1 [shape = 'u32[144,128]{1,0:T(1,128)}', space=vmem, size = 0x12000, scoped, tag = 'internal scratch']
  #allocation2 [shape = 'f32[256,256]{1,0:T(8,128)}', space=vmem, size = 0x40000, scoped, tag = 'scratch operand']
  %s0 = inlined_call_operand.hbm [shape: bf16[256,256], index: 0, kind: input, shape index: {}]
  %s1 = inlined_call_operand.hbm [shape: f32[256,128], index: 1, kind: input, shape index: {}]
  %s2 = inlined_call_operand.hbm [shape: f32[256,128], index: 2, kind: input, shape index: {}]
  %s3 = inlined_call_operand.vmem [shape: f32[1,128], index: 3, kind: input, shape index: {}]
  %s4 = inlined_call_operand.hbm [shape: f32[256,128], index: 4, kind: output, shape index: {}]
  %s5 = sld [smem:[#allocation0]]
  $region46: #{tpu_custom_call.1} parent=0
    _
  %s7 = ssub.s32 1, %s5
  %s8 = scalar_select 0, %s7, %s5
  $region1: #{tpu_custom_call.1} parent=0
    #allocation3 [shape = 'u8[131072]{0}', space=vmem, size = 0x20000, scoped, tag = 'input window, operand 0, single buffered']
    #allocation4 [shape = 's32[1]{0}', space=sflag, size = 0x4, scoped, tag = 'scoped memory for tpu_custom_call.1']
    #allocation5 [shape = 's32[1]{0}', space=sflag, size = 0x4, scoped, tag = 'scoped memory for tpu_custom_call.1']
    #allocation6 [shape = 'u8[131072]{0}', space=vmem, size = 0x20000, scoped, tag = 'input window, operand 1, single buffered']
    #allocation7 [shape = 's32[1]{0}', space=sflag, size = 0x4, scoped, tag = 'scoped memory for tpu_custom_call.1']
    #allocation8 [shape = 'u8[131072]{0}', space=vmem, size = 0x20000, scoped, tag = 'input window, operand 2, single buffered']
    #allocation9 [shape = 'u8[131072]{0}', space=vmem, size = 0x20000, scoped, tag = 'output window, operand 0, single buffered']
    %9 = vsyncpa [#allocation4], 0
    %10 = vsyncpa [#allocation7], 0
    %11 = vsyncpa [#allocation5], 0
    // Predicated region
    $region2: #{tpu_custom_call.1} parent=1 // pred_check
      _
    $region3: #{tpu_custom_call.1} parent=1 // pred_check_branch
      %13 = sbr.rel (0) target = $region5
    $region4: #{tpu_custom_call.1} parent=1 // pred_region
      %s15 = ssub.s32 4096, 4096
      %16 = vsyncadd [#allocation4], %s15
      %s17 = sshll.u32 [#allocation3], 4
      %s18 = int_to_ptr.vmem [resolvable:$true] %s17
      %23 = dma.hbm_to_vmem [thread:$0]  %s0, 4096, %s18, [#allocation4], 128, 128, 8
    $region5: #{tpu_custom_call.1} parent=1 // pred_fallthru
      _
    // Predicated region
    $region6: #{tpu_custom_call.1} parent=1 // pred_check
      _
    $region7: #{tpu_custom_call.1} parent=1 // pred_check_branch
      %25 = sbr.rel (0) target = $region9
    $region8: #{tpu_custom_call.1} parent=1 // pred_region
      %s27 = ssub.s32 4096, 4096
      %28 = vsyncadd [#allocation7], %s27
      %s29 = sshll.u32 [#allocation6], 4
      %s30 = int_to_ptr.vmem [resolvable:$true] %s29
      %35 = dma.hbm_to_vmem [thread:$0]  %s1, 4096, %s30, [#allocation7], 128, 128, 8
    $region9: #{tpu_custom_call.1} parent=1 // pred_fallthru
      _
    // Predicated region
    $region10: #{tpu_custom_call.1} parent=1 // pred_check
      _
    $region11: #{tpu_custom_call.1} parent=1 // pred_check_branch
      %37 = sbr.rel (0) target = $region13
    $region12: #{tpu_custom_call.1} parent=1 // pred_region
      %s39 = ssub.s32 4096, 4096
      %40 = vsyncadd [#allocation7], %s39
      %s41 = sshll.u32 [#allocation8], 4
      %s42 = int_to_ptr.vmem [resolvable:$true] %s41
      %47 = dma.hbm_to_vmem [thread:$0]  %s2, 4096, %s42, [#allocation7], 128, 128, 8
    $region13: #{tpu_custom_call.1} parent=1 // pred_fallthru
      _
    // Predicated region
    $region14: #{tpu_custom_call.1} parent=1 // pred_check
      _
    $region15: #{tpu_custom_call.1} parent=1 // pred_check_branch
      %49 = sbr.rel (0) target = $region17
    $region16: #{tpu_custom_call.1} parent=1 // pred_region
      _
    $region17: #{tpu_custom_call.1} parent=1 // pred_fallthru
      _
    // Predicated region
    $region18: #{tpu_custom_call.1} parent=1 // pred_check
      _
    $region19: #{tpu_custom_call.1} parent=1 // pred_check_branch
      %51 = sbr.rel (0) target = $region21
    $region20: #{tpu_custom_call.1} parent=1 // pred_region
      %52 = dma.done [#allocation4], 4096
    $region21: #{tpu_custom_call.1} parent=1 // pred_fallthru
      _
    // Predicated region
    $region22: #{tpu_custom_call.1} parent=1 // pred_check
      _
    $region23: #{tpu_custom_call.1} parent=1 // pred_check_branch
      %54 = sbr.rel (0) target = $region25
    $region24: #{tpu_custom_call.1} parent=1 // pred_region
      %55 = dma.done [#allocation7], 4096
    $region25: #{tpu_custom_call.1} parent=1 // pred_fallthru
      _
    // Predicated region
    $region26: #{tpu_custom_call.1} parent=1 // pred_check
      _
    $region27: #{tpu_custom_call.1} parent=1 // pred_check_branch
      %57 = sbr.rel (0) target = $region29
    $region28: #{tpu_custom_call.1} parent=1 // pred_region
      %58 = dma.done [#allocation7], 4096
    $region29: #{tpu_custom_call.1} parent=1 // pred_fallthru
      _
    %p60 = scmp.eq.s32.totalorder 0, 0
    // Predicated region
    $region30: #{tpu_custom_call.1} parent=1 // pred_check
      %p61 = pneg %p60
    $region31: #{tpu_custom_call.1} parent=1 // pred_check_branch
      %63 = sbr.rel (%p61) target = $region33
    $region32: #{tpu_custom_call.1} parent=1 // pred_region
      %64 = vst [vmem:[#allocation2] sm:$0xff] 0.0
      %65 = vst [vmem:[#allocation2 + $0x10] sm:$0xff] 0.0
      %66 = vst [vmem:[#allocation2 + $0x20] sm:$0xff] 0.0
      %67 = vst [vmem:[#allocation2 + $0x30] sm:$0xff] 0.0
      %68 = vst [vmem:[#allocation2 + $0x40] sm:$0xff] 0.0
      %69 = vst [vmem:[#allocation2 + $0x50] sm:$0xff] 0.0
      %70 = vst [vmem:[#allocation2 + $0x60] sm:$0xff] 0.0
      %71 = vst [vmem:[#allocation2 + $0x70] sm:$0xff] 0.0
      %72 = vst [vmem:[#allocation2 + $0x80] sm:$0xff] 0.0
      %73 = vst [vmem:[#allocation2 + $0x90] sm:$0xff] 0.0
      %74 = vst [vmem:[#allocation2 + $0xa0] sm:$0xff] 0.0
      %75 = vst [vmem:[#allocation2 + $0xb0] sm:$0xff] 0.0
      %76 = vst [vmem:[#allocation2 + $0xc0] sm:$0xff] 0.0
      %77 = vst [vmem:[#allocation2 + $0xd0] sm:$0xff] 0.0
      %78 = vst [vmem:[#allocation2 + $0xe0] sm:$0xff] 0.0
      %79 = vst [vmem:[#allocation2 + $0xf0] sm:$0xff] 0.0
      %80 = vst [vmem:[#allocation2 + $0x100] sm:$0xff] 0.0
      %81 = vst [vmem:[#allocation2 + $0x110] sm:$0xff] 0.0
      %82 = vst [vmem:[#allocation2 + $0x120] sm:$0xff] 0.0
      %83 = vst [vmem:[#allocation2 + $0x130] sm:$0xff] 0.0
      %84 = vst [vmem:[#allocation2 + $0x140] sm:$0xff] 0.0
      %85 = vst [vmem:[#allocation2 + $0x150] sm:$0xff] 0.0
      %86 = vst [vmem:[#allocation2 + $0x160] sm:$0xff] 0.0
      %87 = vst [vmem:[#allocation2 + $0x170] sm:$0xff] 0.0
      %88 = vst [vmem:[#allocation2 + $0x180] sm:$0xff] 0.0
      %89 = vst [vmem:[#allocation2 + $0x190] sm:$0xff] 0.0
      %90 = vst [vmem:[#allocation2 + $0x1a0] sm:$0xff] 0.0
      %91 = vst [vmem:[#allocation2 + $0x1b0] sm:$0xff] 0.0
      %92 = vst [vmem:[#allocation2 + $0x1c0] sm:$0xff] 0.0
      %93 = vst [vmem:[#allocation2 + $0x1d0] sm:$0xff] 0.0
      %94 = vst [vmem:[#allocation2 + $0x1e0] sm:$0xff] 0.0
      %95 = vst [vmem:[#allocation2 + $0x1f0] sm:$0xff] 0.0
    $region33: #{tpu_custom_call.1} parent=1 // pred_fallthru
      _
    %s96 = smul.u32 0, 256
    %s97 = scalar_lea.vmem [#allocation6], %s96
    %v98 = vld [vmem:[%s97] sm:$0xff]
    %v99 = vld [vmem:[%s97 + $0x8] sm:$0xff]
    %v100 = vld [vmem:[%s97 + $0x10] sm:$0xff]
    %v101 = vld [vmem:[%s97 + $0x18] sm:$0xff]
    %v102 = vld [vmem:[%s97 + $0x20] sm:$0xff]
    %v103 = vld [vmem:[%s97 + $0x28] sm:$0xff]
    %v104 = vld [vmem:[%s97 + $0x30] sm:$0xff]
    %v105 = vld [vmem:[%s97 + $0x38] sm:$0xff]
    %v106 = vld [vmem:[%s97 + $0x40] sm:$0xff]
    %v107 = vld [vmem:[%s97 + $0x48] sm:$0xff]
    %v108 = vld [vmem:[%s97 + $0x50] sm:$0xff]
    %v109 = vld [vmem:[%s97 + $0x58] sm:$0xff]
    %v110 = vld [vmem:[%s97 + $0x60] sm:$0xff]
    %v111 = vld [vmem:[%s97 + $0x68] sm:$0xff]
    %v112 = vld [vmem:[%s97 + $0x70] sm:$0xff]
    %v113 = vld [vmem:[%s97 + $0x78] sm:$0xff]
    %v114 = vld [vmem:[%s97 + $0x80] sm:$0xff]
    %v115 = vld [vmem:[%s97 + $0x88] sm:$0xff]
    %v116 = vld [vmem:[%s97 + $0x90] sm:$0xff]
    %v117 = vld [vmem:[%s97 + $0x98] sm:$0xff]
    %v118 = vld [vmem:[%s97 + $0xa0] sm:$0xff]
    %v119 = vld [vmem:[%s97 + $0xa8] sm:$0xff]
    %v120 = vld [vmem:[%s97 + $0xb0] sm:$0xff]
    %v121 = vld [vmem:[%s97 + $0xb8] sm:$0xff]
    %v122 = vld [vmem:[%s97 + $0xc0] sm:$0xff]
    %v123 = vld [vmem:[%s97 + $0xc8] sm:$0xff]
    %v124 = vld [vmem:[%s97 + $0xd0] sm:$0xff]
    %v125 = vld [vmem:[%s97 + $0xd8] sm:$0xff]
    %v126 = vld [vmem:[%s97 + $0xe0] sm:$0xff]
    %v127 = vld [vmem:[%s97 + $0xe8] sm:$0xff]
    %v128 = vld [vmem:[%s97 + $0xf0] sm:$0xff]
    %v129 = vld [vmem:[%s97 + $0xf8] sm:$0xff]
    %v130 = vpack.c.bf16 %v99, %v98
    %v131 = vpack.c.bf16 %v101, %v100
    %v132 = vpack.c.bf16 %v103, %v102
    %v133 = vpack.c.bf16 %v105, %v104
    %v134 = vpack.c.bf16 %v107, %v106
    %v135 = vpack.c.bf16 %v109, %v108
    %v136 = vpack.c.bf16 %v111, %v110
    %v137 = vpack.c.bf16 %v113, %v112
    %v138 = vpack.c.bf16 %v115, %v114
    %v139 = vpack.c.bf16 %v117, %v116
    %v140 = vpack.c.bf16 %v119, %v118
    %v141 = vpack.c.bf16 %v121, %v120
    %v142 = vpack.c.bf16 %v123, %v122
    %v143 = vpack.c.bf16 %v125, %v124
    %v144 = vpack.c.bf16 %v127, %v126
    %v145 = vpack.c.bf16 %v129, %v128
    %v146 = vld [vmem:[#allocation2] sm:$0xff]
    %v147 = vld [vmem:[#allocation2 + $0x10] sm:$0xff]
    %v148 = vld [vmem:[#allocation2 + $0x20] sm:$0xff]
    %v149 = vld [vmem:[#allocation2 + $0x30] sm:$0xff]
    %v150 = vld [vmem:[#allocation2 + $0x40] sm:$0xff]
    %v151 = vld [vmem:[#allocation2 + $0x50] sm:$0xff]
    %v152 = vld [vmem:[#allocation2 + $0x60] sm:$0xff]
    %v153 = vld [vmem:[#allocation2 + $0x70] sm:$0xff]
    %v154 = vld [vmem:[#allocation2 + $0x80] sm:$0xff]
    %v155 = vld [vmem:[#allocation2 + $0x90] sm:$0xff]
    %v156 = vld [vmem:[#allocation2 + $0xa0] sm:$0xff]
    %v157 = vld [vmem:[#allocation2 + $0xb0] sm:$0xff]
    %v158 = vld [vmem:[#allocation2 + $0xc0] sm:$0xff]
    %v159 = vld [vmem:[#allocation2 + $0xd0] sm:$0xff]
    %v160 = vld [vmem:[#allocation2 + $0xe0] sm:$0xff]
    %v161 = vld [vmem:[#allocation2 + $0xf0] sm:$0xff]
    %v162 = vld [vmem:[#allocation2 + $0x100] sm:$0xff]
    %v163 = vld [vmem:[#allocation2 + $0x110] sm:$0xff]
    %v164 = vld [vmem:[#allocation2 + $0x120] sm:$0xff]
    %v165 = vld [vmem:[#allocation2 + $0x130] sm:$0xff]
    %v166 = vld [vmem:[#allocation2 + $0x140] sm:$0xff]
    %v167 = vld [vmem:[#allocation2 + $0x150] sm:$0xff]
    %v168 = vld [vmem:[#allocation2 + $0x160] sm:$0xff]
    %v169 = vld [vmem:[#allocation2 + $0x170] sm:$0xff]
    %v170 = vld [vmem:[#allocation2 + $0x180] sm:$0xff]
    %v171 = vld [vmem:[#allocation2 + $0x190] sm:$0xff]
    %v172 = vld [vmem:[#allocation2 + $0x1a0] sm:$0xff]
    %v173 = vld [vmem:[#allocation2 + $0x1b0] sm:$0xff]
    %v174 = vld [vmem:[#allocation2 + $0x1c0] sm:$0xff]
    %v175 = vld [vmem:[#allocation2 + $0x1d0] sm:$0xff]
    %v176 = vld [vmem:[#allocation2 + $0x1e0] sm:$0xff]
    %v177 = vld [vmem:[#allocation2 + $0x1f0] sm:$0xff]
    %v178 = vld [vmem:[#allocation3] sm:$0xff]
    %v179 = vld [vmem:[#allocation3 + $0x8] sm:$0xff]
    %v180 = vld [vmem:[#allocation3 + $0x10] sm:$0xff]
    %v181 = vld [vmem:[#allocation3 + $0x18] sm:$0xff]
    %v182 = vld [vmem:[#allocation3 + $0x20] sm:$0xff]
    %v183 = vld [vmem:[#allocation3 + $0x28] sm:$0xff]
    %v184 = vld [vmem:[#allocation3 + $0x30] sm:$0xff]
    %v185 = vld [vmem:[#allocation3 + $0x38] sm:$0xff]
    %v186 = vld [vmem:[#allocation3 + $0x40] sm:$0xff]
    %v187 = vld [vmem:[#allocation3 + $0x48] sm:$0xff]
    %v188 = vld [vmem:[#allocation3 + $0x50] sm:$0xff]
    %v189 = vld [vmem:[#allocation3 + $0x58] sm:$0xff]
    %v190 = vld [vmem:[#allocation3 + $0x60] sm:$0xff]
    %v191 = vld [vmem:[#allocation3 + $0x68] sm:$0xff]
    %v192 = vld [vmem:[#allocation3 + $0x70] sm:$0xff]
    %v193 = vld [vmem:[#allocation3 + $0x78] sm:$0xff]
    %v194 = vld [vmem:[#allocation3 + $0x80] sm:$0xff]
    %v195 = vld [vmem:[#allocation3 + $0x88] sm:$0xff]
    %v196 = vld [vmem:[#allocation3 + $0x90] sm:$0xff]
    %v197 = vld [vmem:[#allocation3 + $0x98] sm:$0xff]
    %v198 = vld [vmem:[#allocation3 + $0xa0] sm:$0xff]
    %v199 = vld [vmem:[#allocation3 + $0xa8] sm:$0xff]
    %v200 = vld [vmem:[#allocation3 + $0xb0] sm:$0xff]
    %v201 = vld [vmem:[#allocation3 + $0xb8] sm:$0xff]
    %v202 = vld [vmem:[#allocation3 + $0xc0] sm:$0xff]
    %v203 = vld [vmem:[#allocation3 + $0xc8] sm:$0xff]
    %v204 = vld [vmem:[#allocation3 + $0xd0] sm:$0xff]
    %v205 = vld [vmem:[#allocation3 + $0xd8] sm:$0xff]
    %v206 = vld [vmem:[#allocation3 + $0xe0] sm:$0xff]
    %v207 = vld [vmem:[#allocation3 + $0xe8] sm:$0xff]
    %v208 = vld [vmem:[#allocation3 + $0xf0] sm:$0xff]
    %v209 = vld [vmem:[#allocation3 + $0xf8] sm:$0xff]
    %v242 = vunpack.c.l.b16 %v178
    %v243 = vunpack.c.h.b16 %v178
    %v244 = vunpack.c.l.b16 %v179
    %v245 = vunpack.c.h.b16 %v179
    %v246 = vunpack.c.l.b16 %v180
    %v247 = vunpack.c.h.b16 %v180
    %v248 = vunpack.c.l.b16 %v181
    %v249 = vunpack.c.h.b16 %v181
    %v250 = vunpack.c.l.b16 %v182
    %v251 = vunpack.c.h.b16 %v182
    %v252 = vunpack.c.l.b16 %v183
    %v253 = vunpack.c.h.b16 %v183
    %v254 = vunpack.c.l.b16 %v184
    %v255 = vunpack.c.h.b16 %v184
    %v256 = vunpack.c.l.b16 %v185
    %v257 = vunpack.c.h.b16 %v185
    %v258 = vunpack.c.l.b16 %v186
    %v259 = vunpack.c.h.b16 %v186
    %v260 = vunpack.c.l.b16 %v187
    %v261 = vunpack.c.h.b16 %v187
    %v262 = vunpack.c.l.b16 %v188
    %v263 = vunpack.c.h.b16 %v188
    %v264 = vunpack.c.l.b16 %v189
    %v265 = vunpack.c.h.b16 %v189
    %v266 = vunpack.c.l.b16 %v190
    %v267 = vunpack.c.h.b16 %v190
    %v268 = vunpack.c.l.b16 %v191
    %v269 = vunpack.c.h.b16 %v191
    %v270 = vunpack.c.l.b16 %v192
    %v271 = vunpack.c.h.b16 %v192
    %v272 = vunpack.c.l.b16 %v193
    %v273 = vunpack.c.h.b16 %v193
    %v274 = vunpack.c.l.b16 %v194
    %v275 = vunpack.c.h.b16 %v194
    %v276 = vunpack.c.l.b16 %v195
    %v277 = vunpack.c.h.b16 %v195
    %v278 = vunpack.c.l.b16 %v196
    %v279 = vunpack.c.h.b16 %v196
    %v280 = vunpack.c.l.b16 %v197
    %v281 = vunpack.c.h.b16 %v197
    %v282 = vunpack.c.l.b16 %v198
    %v283 = vunpack.c.h.b16 %v198
    %v284 = vunpack.c.l.b16 %v199
    %v285 = vunpack.c.h.b16 %v199
    %v286 = vunpack.c.l.b16 %v200
    %v287 = vunpack.c.h.b16 %v200
    %v288 = vunpack.c.l.b16 %v201
    %v289 = vunpack.c.h.b16 %v201
    %v290 = vunpack.c.l.b16 %v202
    %v291 = vunpack.c.h.b16 %v202
    %v292 = vunpack.c.l.b16 %v203
    %v293 = vunpack.c.h.b16 %v203
    %v294 = vunpack.c.l.b16 %v204
    %v295 = vunpack.c.h.b16 %v204
    %v296 = vunpack.c.l.b16 %v205
    %v297 = vunpack.c.h.b16 %v205
    %v298 = vunpack.c.l.b16 %v206
    %v299 = vunpack.c.h.b16 %v206
    %v300 = vunpack.c.l.b16 %v207
    %v301 = vunpack.c.h.b16 %v207
    %v302 = vunpack.c.l.b16 %v208
    %v303 = vunpack.c.h.b16 %v208
    %v304 = vunpack.c.l.b16 %v209
    %v305 = vunpack.c.h.b16 %v209
    %v306 = vpack.c.b16 %v244, %v242
    %v307 = vpack.c.b16 %v245, %v243
    %v308 = vpack.c.b16 %v248, %v246
    %v309 = vpack.c.b16 %v249, %v247
    %v310 = vpack.c.b16 %v252, %v250
    %v311 = vpack.c.b16 %v253, %v251
    %v312 = vpack.c.b16 %v256, %v254
    %v313 = vpack.c.b16 %v257, %v255
    %v314 = vpack.c.b16 %v260, %v258
    %v315 = vpack.c.b16 %v261, %v259
    %v316 = vpack.c.b16 %v264, %v262
    %v317 = vpack.c.b16 %v265, %v263
    %v318 = vpack.c.b16 %v268, %v266
    %v319 = vpack.c.b16 %v269, %v267
    %v320 = vpack.c.b16 %v272, %v270
    %v321 = vpack.c.b16 %v273, %v271
    %v322 = vpack.c.b16 %v276, %v274
    %v323 = vpack.c.b16 %v277, %v275
    %v324 = vpack.c.b16 %v280, %v278
    %v325 = vpack.c.b16 %v281, %v279
    %v326 = vpack.c.b16 %v284, %v282
    %v327 = vpack.c.b16 %v285, %v283
    %v328 = vpack.c.b16 %v288, %v286
    %v329 = vpack.c.b16 %v289, %v287
    %v330 = vpack.c.b16 %v292, %v290
    %v331 = vpack.c.b16 %v293, %v291
    %v332 = vpack.c.b16 %v296, %v294
    %v333 = vpack.c.b16 %v297, %v295
    %v334 = vpack.c.b16 %v300, %v298
    %v335 = vpack.c.b16 %v301, %v299
    %v336 = vpack.c.b16 %v304, %v302
    %v337 = vpack.c.b16 %v305, %v303
    %370 = vmatprep.subr.bf16.mxu0 0
    %371 = vmatpush1.bf16.msra.mxu0 %v130
    %372 = vmatprep.subr.bf16.mxu0 0
    %373 = vmatpush1.bf16.msra.mxu0 %v131
    %374 = vmatprep.subr.bf16.mxu0 0
    %375 = vmatpush1.bf16.msra.mxu0 %v132
    %376 = vmatprep.subr.bf16.mxu0 0
    %377 = vmatpush1.bf16.msra.mxu0 %v133
    %378 = vmatprep.subr.bf16.mxu0 0
    %379 = vmatpush1.bf16.msra.mxu0 %v134
    %380 = vmatprep.subr.bf16.mxu0 0
    %381 = vmatpush1.bf16.msra.mxu0 %v135
    %382 = vmatprep.subr.bf16.mxu0 0
    %383 = vmatpush1.bf16.msra.mxu0 %v136
    %384 = vmatprep.subr.bf16.mxu0 0
    %385 = vmatpush1.bf16.msra.mxu0 %v137
    %386 = vmatprep.subr.bf16.mxu0 0
    %387 = vmatpush1.bf16.msra.mxu0 %v138
    %388 = vmatprep.subr.bf16.mxu0 0
    %389 = vmatpush1.bf16.msra.mxu0 %v139
    %390 = vmatprep.subr.bf16.mxu0 0
    %391 = vmatpush1.bf16.msra.mxu0 %v140
    %392 = vmatprep.subr.bf16.mxu0 0
    %393 = vmatpush1.bf16.msra.mxu0 %v141
    %394 = vmatprep.subr.bf16.mxu0 0
    %395 = vmatpush1.bf16.msra.mxu0 %v142
    %396 = vmatprep.subr.bf16.mxu0 0
    %397 = vmatpush1.bf16.msra.mxu0 %v143
    %398 = vmatprep.subr.bf16.mxu0 0
    %399 = vmatpush1.bf16.msra.mxu0 %v144
    %400 = vmatprep.subr.bf16.mxu0 0
    %401 = vmatpush1.bf16.msra.mxu0 %v145
    %402 = vmatprep.mubr.bf16.mxu0 %v307
    %403 = vmatmul.mubr.bf16.gmra.mrb[0].mxu0 %v306
    %v404 = vpop.f32.mrb[0].mxu0
    %v405 = vadd.f32 0.0, %v404
    %v406 = vpop.f32.mrb[0].mxu0
    %v407 = vpop.f32.mrb[0].mxu0
    %v408 = vadd.f32 0.0, %v407
    %v409 = vpop.f32.mrb[0].mxu0
    %410 = vmatprep.mubr.bf16.mxu0 %v309
    %411 = vmatmul.mubr.bf16.gmra.mrb[0].mxu0 %v308
    %v412 = vpop.f32.mrb[0].mxu0
    %v413 = vadd.f32 0.0, %v412
    %v414 = vpop.f32.mrb[0].mxu0
    %v415 = vpop.f32.mrb[0].mxu0
    %v416 = vadd.f32 0.0, %v415
    %v417 = vpop.f32.mrb[0].mxu0
    %418 = vmatprep.mubr.bf16.mxu0 %v311
    %419 = vmatmul.mubr.bf16.gmra.mrb[0].mxu0 %v310
    %v420 = vpop.f32.mrb[0].mxu0
    %v421 = vadd.f32 0.0, %v420
    %v422 = vpop.f32.mrb[0].mxu0
    %v423 = vpop.f32.mrb[0].mxu0
    %v424 = vadd.f32 0.0, %v423
    %v425 = vpop.f32.mrb[0].mxu0
    %426 = vmatprep.mubr.bf16.mxu0 %v313
    %427 = vmatmul.mubr.bf16.gmra.mrb[0].mxu0 %v312
    %v428 = vpop.f32.mrb[0].mxu0
    %v429 = vadd.f32 0.0, %v428
    %v430 = vpop.f32.mrb[0].mxu0
    %v431 = vpop.f32.mrb[0].mxu0
    %v432 = vadd.f32 0.0, %v431
    %v433 = vpop.f32.mrb[0].mxu0
    %434 = vmatprep.mubr.bf16.mxu0 %v315
    %435 = vmatmul.mubr.bf16.gmra.mrb[0].mxu0 %v314
    %v436 = vpop.f32.mrb[0].mxu0
    %v437 = vadd.f32 0.0, %v436
    %v438 = vpop.f32.mrb[0].mxu0
    %v439 = vpop.f32.mrb[0].mxu0
    %v440 = vadd.f32 0.0, %v439
    %v441 = vpop.f32.mrb[0].mxu0
    %442 = vmatprep.mubr.bf16.mxu0 %v317
    %443 = vmatmul.mubr.bf16.gmra.mrb[0].mxu0 %v316
    %v444 = vpop.f32.mrb[0].mxu0
    %v445 = vadd.f32 0.0, %v444
    %v446 = vpop.f32.mrb[0].mxu0
    %v447 = vpop.f32.mrb[0].mxu0
    %v448 = vadd.f32 0.0, %v447
    %v449 = vpop.f32.mrb[0].mxu0
    %450 = vmatprep.mubr.bf16.mxu0 %v319
    %451 = vmatmul.mubr.bf16.gmra.mrb[0].mxu0 %v318
    %v452 = vpop.f32.mrb[0].mxu0
    %v453 = vadd.f32 0.0, %v452
    %v454 = vpop.f32.mrb[0].mxu0
    %v455 = vpop.f32.mrb[0].mxu0
    %v456 = vadd.f32 0.0, %v455
    %v457 = vpop.f32.mrb[0].mxu0
    %458 = vmatprep.mubr.bf16.mxu0 %v321
    %459 = vmatmul.mubr.bf16.gmra.mrb[0].mxu0 %v320
    %v460 = vpop.f32.mrb[0].mxu0
    %v461 = vadd.f32 0.0, %v460
    %v462 = vpop.f32.mrb[0].mxu0
    %v463 = vpop.f32.mrb[0].mxu0
    %v464 = vadd.f32 0.0, %v463
    %v465 = vpop.f32.mrb[0].mxu0
    %466 = vmatprep.mubr.bf16.mxu0 %v323
    %467 = vmatmul.mubr.bf16.gmra.mrb[0].mxu0 %v322
    %v468 = vpop.f32.mrb[0].mxu0
    %v469 = vadd.f32 0.0, %v468
    %v470 = vpop.f32.mrb[0].mxu0
    %v471 = vpop.f32.mrb[0].mxu0
    %v472 = vadd.f32 0.0, %v471
    %v473 = vpop.f32.mrb[0].mxu0
    %474 = vmatprep.mubr.bf16.mxu0 %v325
    %475 = vmatmul.mubr.bf16.gmra.mrb[0].mxu0 %v324
    %v476 = vpop.f32.mrb[0].mxu0
    %v477 = vadd.f32 0.0, %v476
    %v478 = vpop.f32.mrb[0].mxu0
    %v479 = vpop.f32.mrb[0].mxu0
    %v480 = vadd.f32 0.0, %v479
    %v481 = vpop.f32.mrb[0].mxu0
    %482 = vmatprep.mubr.bf16.mxu0 %v327
    %483 = vmatmul.mubr.bf16.gmra.mrb[0].mxu0 %v326
    %v484 = vpop.f32.mrb[0].mxu0
    %v485 = vadd.f32 0.0, %v484
    %v486 = vpop.f32.mrb[0].mxu0
    %v487 = vpop.f32.mrb[0].mxu0
    %v488 = vadd.f32 0.0, %v487
    %v489 = vpop.f32.mrb[0].mxu0
    %490 = vmatprep.mubr.bf16.mxu0 %v329
    %491 = vmatmul.mubr.bf16.gmra.mrb[0].mxu0 %v328
    %v492 = vpop.f32.mrb[0].mxu0
    %v493 = vadd.f32 0.0, %v492
    %v494 = vpop.f32.mrb[0].mxu0
    %v495 = vpop.f32.mrb[0].mxu0
    %v496 = vadd.f32 0.0, %v495
    %v497 = vpop.f32.mrb[0].mxu0
    %498 = vmatprep.mubr.bf16.mxu0 %v331
    %499 = vmatmul.mubr.bf16.gmra.mrb[0].mxu0 %v330
    %v500 = vpop.f32.mrb[0].mxu0
    %v501 = vadd.f32 0.0, %v500
    %v502 = vpop.f32.mrb[0].mxu0
    %v503 = vpop.f32.mrb[0].mxu0
    %v504 = vadd.f32 0.0, %v503
    %v505 = vpop.f32.mrb[0].mxu0
    %506 = vmatprep.mubr.bf16.mxu0 %v333
    %507 = vmatmul.mubr.bf16.gmra.mrb[0].mxu0 %v332
    %v508 = vpop.f32.mrb[0].mxu0
    %v509 = vadd.f32 0.0, %v508
    %v510 = vpop.f32.mrb[0].mxu0
    %v511 = vpop.f32.mrb[0].mxu0
    %v512 = vadd.f32 0.0, %v511
    %v513 = vpop.f32.mrb[0].mxu0
    %514 = vmatprep.mubr.bf16.mxu0 %v335
    %515 = vmatmul.mubr.bf16.gmra.mrb[0].mxu0 %v334
    %v516 = vpop.f32.mrb[0].mxu0
    %v517 = vadd.f32 0.0, %v516
    %v518 = vpop.f32.mrb[0].mxu0
    %v519 = vpop.f32.mrb[0].mxu0
    %v520 = vadd.f32 0.0, %v519
    %v521 = vpop.f32.mrb[0].mxu0
    %522 = vmatprep.mubr.bf16.mxu0 %v337
    %523 = vmatmul.mubr.bf16.gmra.mrb[0].mxu0 %v336
    %v524 = vpop.f32.mrb[0].mxu0
    %v525 = vadd.f32 0.0, %v524
    %v526 = vpop.f32.mrb[0].mxu0
    %v527 = vpop.f32.mrb[0].mxu0
    %v528 = vadd.f32 0.0, %v527
    %v529 = vpop.f32.mrb[0].mxu0
    %530 = vdwg.mxu0
    %v531 = vadd.f32 %v146, %v405
    %v532 = vadd.f32 %v147, %v408
    %v533 = vadd.f32 %v148, %v413
    %v534 = vadd.f32 %v149, %v416
    %v535 = vadd.f32 %v150, %v421
    %v536 = vadd.f32 %v151, %v424
    %v537 = vadd.f32 %v152, %v429
    %v538 = vadd.f32 %v153, %v432
    %v539 = vadd.f32 %v154, %v437
    %v540 = vadd.f32 %v155, %v440
    %v541 = vadd.f32 %v156, %v445
    %v542 = vadd.f32 %v157, %v448
    %v543 = vadd.f32 %v158, %v453
    %v544 = vadd.f32 %v159, %v456
    %v545 = vadd.f32 %v160, %v461
    %v546 = vadd.f32 %v161, %v464
    %v547 = vadd.f32 %v162, %v469
    %v548 = vadd.f32 %v163, %v472
    %v549 = vadd.f32 %v164, %v477
    %v550 = vadd.f32 %v165, %v480
    %v551 = vadd.f32 %v166, %v485
    %v552 = vadd.f32 %v167, %v488
    %v553 = vadd.f32 %v168, %v493
    %v554 = vadd.f32 %v169, %v496
    %v555 = vadd.f32 %v170, %v501
    %v556 = vadd.f32 %v171, %v504
    %v557 = vadd.f32 %v172, %v509
    %v558 = vadd.f32 %v173, %v512
    %v559 = vadd.f32 %v174, %v517
    %v560 = vadd.f32 %v175, %v520
    %v561 = vadd.f32 %v176, %v525
    %v562 = vadd.f32 %v177, %v528
    %563 = vst [vmem:[#allocation2] sm:$0xff] %v531
    %564 = vst [vmem:[#allocation2 + $0x10] sm:$0xff] %v532
    %565 = vst [vmem:[#allocation2 + $0x20] sm:$0xff] %v533
    %566 = vst [vmem:[#allocation2 + $0x30] sm:$0xff] %v534
    %567 = vst [vmem:[#allocation2 + $0x40] sm:$0xff] %v535
    %568 = vst [vmem:[#allocation2 + $0x50] sm:$0xff] %v536
    %569 = vst [vmem:[#allocation2 + $0x60] sm:$0xff] %v537
    %570 = vst [vmem:[#allocation2 + $0x70] sm:$0xff] %v538
    %571 = vst [vmem:[#allocation2 + $0x80] sm:$0xff] %v539
    %572 = vst [vmem:[#allocation2 + $0x90] sm:$0xff] %v540
    %573 = vst [vmem:[#allocation2 + $0xa0] sm:$0xff] %v541
    %574 = vst [vmem:[#allocation2 + $0xb0] sm:$0xff] %v542
    %575 = vst [vmem:[#allocation2 + $0xc0] sm:$0xff] %v543
    %576 = vst [vmem:[#allocation2 + $0xd0] sm:$0xff] %v544
    %577 = vst [vmem:[#allocation2 + $0xe0] sm:$0xff] %v545
    %578 = vst [vmem:[#allocation2 + $0xf0] sm:$0xff] %v546
    %579 = vst [vmem:[#allocation2 + $0x100] sm:$0xff] %v547
    %580 = vst [vmem:[#allocation2 + $0x110] sm:$0xff] %v548
    %581 = vst [vmem:[#allocation2 + $0x120] sm:$0xff] %v549
    %582 = vst [vmem:[#allocation2 + $0x130] sm:$0xff] %v550
    %583 = vst [vmem:[#allocation2 + $0x140] sm:$0xff] %v551
    %584 = vst [vmem:[#allocation2 + $0x150] sm:$0xff] %v552
    %585 = vst [vmem:[#allocation2 + $0x160] sm:$0xff] %v553
    %586 = vst [vmem:[#allocation2 + $0x170] sm:$0xff] %v554
    %587 = vst [vmem:[#allocation2 + $0x180] sm:$0xff] %v555
    %588 = vst [vmem:[#allocation2 + $0x190] sm:$0xff] %v556
    %589 = vst [vmem:[#allocation2 + $0x1a0] sm:$0xff] %v557
    %590 = vst [vmem:[#allocation2 + $0x1b0] sm:$0xff] %v558
    %591 = vst [vmem:[#allocation2 + $0x1c0] sm:$0xff] %v559
    %592 = vst [vmem:[#allocation2 + $0x1d0] sm:$0xff] %v560
    %593 = vst [vmem:[#allocation2 + $0x1e0] sm:$0xff] %v561
    %594 = vst [vmem:[#allocation2 + $0x1f0] sm:$0xff] %v562
    // Predicated region
    $region34: #{tpu_custom_call.1} parent=1 // pred_check
      %p595 = pneg %p60
    $region35: #{tpu_custom_call.1} parent=1 // pred_check_branch
      %597 = sbr.rel (%p595) target = $region37
    $region36: #{tpu_custom_call.1} parent=1 // pred_region
      %s598 = smul.u32 0, 256
      %s599 = scalar_lea.vmem [#allocation6], %s598
      %v600 = vld [vmem:[%s599] sm:$0xff]
      %v601 = vld [vmem:[%s599 + $0x8] sm:$0xff]
      %v602 = vld [vmem:[%s599 + $0x10] sm:$0xff]
      %v603 = vld [vmem:[%s599 + $0x18] sm:$0xff]
      %v604 = vld [vmem:[%s599 + $0x20] sm:$0xff]
      %v605 = vld [vmem:[%s599 + $0x28] sm:$0xff]
      %v606 = vld [vmem:[%s599 + $0x30] sm:$0xff]
      %v607 = vld [vmem:[%s599 + $0x38] sm:$0xff]
      %v608 = vld [vmem:[%s599 + $0x40] sm:$0xff]
      %v609 = vld [vmem:[%s599 + $0x48] sm:$0xff]
      %v610 = vld [vmem:[%s599 + $0x50] sm:$0xff]
      %v611 = vld [vmem:[%s599 + $0x58] sm:$0xff]
      %v612 = vld [vmem:[%s599 + $0x60] sm:$0xff]
      %v613 = vld [vmem:[%s599 + $0x68] sm:$0xff]
      %v614 = vld [vmem:[%s599 + $0x70] sm:$0xff]
      %v615 = vld [vmem:[%s599 + $0x78] sm:$0xff]
      %v616 = vld [vmem:[%s599 + $0x80] sm:$0xff]
      %v617 = vld [vmem:[%s599 + $0x88] sm:$0xff]
      %v618 = vld [vmem:[%s599 + $0x90] sm:$0xff]
      %v619 = vld [vmem:[%s599 + $0x98] sm:$0xff]
      %v620 = vld [vmem:[%s599 + $0xa0] sm:$0xff]
      %v621 = vld [vmem:[%s599 + $0xa8] sm:$0xff]
      %v622 = vld [vmem:[%s599 + $0xb0] sm:$0xff]
      %v623 = vld [vmem:[%s599 + $0xb8] sm:$0xff]
      %v624 = vld [vmem:[%s599 + $0xc0] sm:$0xff]
      %v625 = vld [vmem:[%s599 + $0xc8] sm:$0xff]
      %v626 = vld [vmem:[%s599 + $0xd0] sm:$0xff]
      %v627 = vld [vmem:[%s599 + $0xd8] sm:$0xff]
      %v628 = vld [vmem:[%s599 + $0xe0] sm:$0xff]
      %v629 = vld [vmem:[%s599 + $0xe8] sm:$0xff]
      %v630 = vld [vmem:[%s599 + $0xf0] sm:$0xff]
      %v631 = vld [vmem:[%s599 + $0xf8] sm:$0xff]
      %632 = vst [vmem:[#allocation2 + $0x8] sm:$0xff] %v600
      %633 = vst [vmem:[#allocation2 + $0x18] sm:$0xff] %v601
      %634 = vst [vmem:[#allocation2 + $0x28] sm:$0xff] %v602
      %635 = vst [vmem:[#allocation2 + $0x38] sm:$0xff] %v603
      %636 = vst [vmem:[#allocation2 + $0x48] sm:$0xff] %v604
      %637 = vst [vmem:[#allocation2 + $0x58] sm:$0xff] %v605
      %638 = vst [vmem:[#allocation2 + $0x68] sm:$0xff] %v606
      %639 = vst [vmem:[#allocation2 + $0x78] sm:$0xff] %v607
      %640 = vst [vmem:[#allocation2 + $0x88] sm:$0xff] %v608
      %641 = vst [vmem:[#allocation2 + $0x98] sm:$0xff] %v609
      %642 = vst [vmem:[#allocation2 + $0xa8] sm:$0xff] %v610
      %643 = vst [vmem:[#allocation2 + $0xb8] sm:$0xff] %v611
      %644 = vst [vmem:[#allocation2 + $0xc8] sm:$0xff] %v612
      %645 = vst [vmem:[#allocation2 + $0xd8] sm:$0xff] %v613
      %646 = vst [vmem:[#allocation2 + $0xe8] sm:$0xff] %v614
      %647 = vst [vmem:[#allocation2 + $0xf8] sm:$0xff] %v615
      %648 = vst [vmem:[#allocation2 + $0x108] sm:$0xff] %v616
      %649 = vst [vmem:[#allocation2 + $0x118] sm:$0xff] %v617
      %650 = vst [vmem:[#allocation2 + $0x128] sm:$0xff] %v618
      %651 = vst [vmem:[#allocation2 + $0x138] sm:$0xff] %v619
      %652 = vst [vmem:[#allocation2 + $0x148] sm:$0xff] %v620
      %653 = vst [vmem:[#allocation2 + $0x158] sm:$0xff] %v621
      %654 = vst [vmem:[#allocation2 + $0x168] sm:$0xff] %v622
      %655 = vst [vmem:[#allocation2 + $0x178] sm:$0xff] %v623
      %656 = vst [vmem:[#allocation2 + $0x188] sm:$0xff] %v624
      %657 = vst [vmem:[#allocation2 + $0x198] sm:$0xff] %v625
      %658 = vst [vmem:[#allocation2 + $0x1a8] sm:$0xff] %v626
      %659 = vst [vmem:[#allocation2 + $0x1b8] sm:$0xff] %v627
      %660 = vst [vmem:[#allocation2 + $0x1c8] sm:$0xff] %v628
      %661 = vst [vmem:[#allocation2 + $0x1d8] sm:$0xff] %v629
      %662 = vst [vmem:[#allocation2 + $0x1e8] sm:$0xff] %v630
      %663 = vst [vmem:[#allocation2 + $0x1f8] sm:$0xff] %v631
      %v664 = vld [vmem:[#allocation2] sm:$0xff]
      %v665 = vld [vmem:[#allocation2 + $0x8] sm:$0xff]
      %v666 = vld [vmem:[#allocation2 + $0x10] sm:$0xff]
      %v667 = vld [vmem:[#allocation2 + $0x18] sm:$0xff]
      %v668 = vld [vmem:[#allocation2 + $0x20] sm:$0xff]
      %v669 = vld [vmem:[#allocation2 + $0x28] sm:$0xff]
      %v670 = vld [vmem:[#allocation2 + $0x30] sm:$0xff]
      %v671 = vld [vmem:[#allocation2 + $0x38] sm:$0xff]
      %v672 = vld [vmem:[#allocation2 + $0x40] sm:$0xff]
      %v673 = vld [vmem:[#allocation2 + $0x48] sm:$0xff]
      %v674 = vld [vmem:[#allocation2 + $0x50] sm:$0xff]
      %v675 = vld [vmem:[#allocation2 + $0x58] sm:$0xff]
      %v676 = vld [vmem:[#allocation2 + $0x60] sm:$0xff]
      %v677 = vld [vmem:[#allocation2 + $0x68] sm:$0xff]
      %v678 = vld [vmem:[#allocation2 + $0x70] sm:$0xff]
      %v679 = vld [vmem:[#allocation2 + $0x78] sm:$0xff]
      %v680 = vld [vmem:[#allocation2 + $0x80] sm:$0xff]
      %v681 = vld [vmem:[#allocation2 + $0x88] sm:$0xff]
      %v682 = vld [vmem:[#allocation2 + $0x90] sm:$0xff]
      %v683 = vld [vmem:[#allocation2 + $0x98] sm:$0xff]
      %v684 = vld [vmem:[#allocation2 + $0xa0] sm:$0xff]
      %v685 = vld [vmem:[#allocation2 + $0xa8] sm:$0xff]
      %v686 = vld [vmem:[#allocation2 + $0xb0] sm:$0xff]
      %v687 = vld [vmem:[#allocation2 + $0xb8] sm:$0xff]
      %v688 = vld [vmem:[#allocation2 + $0xc0] sm:$0xff]
      %v689 = vld [vmem:[#allocation2 + $0xc8] sm:$0xff]
      %v690 = vld [vmem:[#allocation2 + $0xd0] sm:$0xff]
      %v691 = vld [vmem:[#allocation2 + $0xd8] sm:$0xff]
      %v692 = vld [vmem:[#allocation2 + $0xe0] sm:$0xff]
      %v693 = vld [vmem:[#allocation2 + $0xe8] sm:$0xff]
      %v694 = vld [vmem:[#allocation2 + $0xf0] sm:$0xff]
      %v695 = vld [vmem:[#allocation2 + $0xf8] sm:$0xff]
      %v696 = vld [vmem:[#allocation2 + $0x100] sm:$0xff]
      %v697 = vld [vmem:[#allocation2 + $0x108] sm:$0xff]
      %v698 = vld [vmem:[#allocation2 + $0x110] sm:$0xff]
      %v699 = vld [vmem:[#allocation2 + $0x118] sm:$0xff]
      %v700 = vld [vmem:[#allocation2 + $0x120] sm:$0xff]
      %v701 = vld [vmem:[#allocation2 + $0x128] sm:$0xff]
      %v702 = vld [vmem:[#allocation2 + $0x130] sm:$0xff]
      %v703 = vld [vmem:[#allocation2 + $0x138] sm:$0xff]
      %v704 = vld [vmem:[#allocation2 + $0x140] sm:$0xff]
      %v705 = vld [vmem:[#allocation2 + $0x148] sm:$0xff]
      %v706 = vld [vmem:[#allocation2 + $0x150] sm:$0xff]
      %v707 = vld [vmem:[#allocation2 + $0x158] sm:$0xff]
      %v708 = vld [vmem:[#allocation2 + $0x160] sm:$0xff]
      %v709 = vld [vmem:[#allocation2 + $0x168] sm:$0xff]
      %v710 = vld [vmem:[#allocation2 + $0x170] sm:$0xff]
      %v711 = vld [vmem:[#allocation2 + $0x178] sm:$0xff]
      %v712 = vld [vmem:[#allocation2 + $0x180] sm:$0xff]
      %v713 = vld [vmem:[#allocation2 + $0x188] sm:$0xff]
      %v714 = vld [vmem:[#allocation2 + $0x190] sm:$0xff]
      %v715 = vld [vmem:[#allocation2 + $0x198] sm:$0xff]
      %v716 = vld [vmem:[#allocation2 + $0x1a0] sm:$0xff]
      %v717 = vld [vmem:[#allocation2 + $0x1a8] sm:$0xff]
      %v718 = vld [vmem:[#allocation2 + $0x1b0] sm:$0xff]
      %v719 = vld [vmem:[#allocation2 + $0x1b8] sm:$0xff]
      %v720 = vld [vmem:[#allocation2 + $0x1c0] sm:$0xff]
      %v721 = vld [vmem:[#allocation2 + $0x1c8] sm:$0xff]
      %v722 = vld [vmem:[#allocation2 + $0x1d0] sm:$0xff]
      %v723 = vld [vmem:[#allocation2 + $0x1d8] sm:$0xff]
      %v724 = vld [vmem:[#allocation2 + $0x1e0] sm:$0xff]
      %v725 = vld [vmem:[#allocation2 + $0x1e8] sm:$0xff]
      %v726 = vld [vmem:[#allocation2 + $0x1f0] sm:$0xff]
      %v727 = vld [vmem:[#allocation2 + $0x1f8] sm:$0xff]
      %v728 = vld [vmem:[#allocation8] sm:$0xff]
      %v729 = vld [vmem:[#allocation8 + $0x8] sm:$0xff]
      %v730 = vld [vmem:[#allocation8 + $0x10] sm:$0xff]
      %v731 = vld [vmem:[#allocation8 + $0x18] sm:$0xff]
      %v732 = vld [vmem:[#allocation8 + $0x20] sm:$0xff]
      %v733 = vld [vmem:[#allocation8 + $0x28] sm:$0xff]
      %v734 = vld [vmem:[#allocation8 + $0x30] sm:$0xff]
      %v735 = vld [vmem:[#allocation8 + $0x38] sm:$0xff]
      %v736 = vld [vmem:[#allocation8 + $0x40] sm:$0xff]
      %v737 = vld [vmem:[#allocation8 + $0x48] sm:$0xff]
      %v738 = vld [vmem:[#allocation8 + $0x50] sm:$0xff]
      %v739 = vld [vmem:[#allocation8 + $0x58] sm:$0xff]
      %v740 = vld [vmem:[#allocation8 + $0x60] sm:$0xff]
      %v741 = vld [vmem:[#allocation8 + $0x68] sm:$0xff]
      %v742 = vld [vmem:[#allocation8 + $0x70] sm:$0xff]
      %v743 = vld [vmem:[#allocation8 + $0x78] sm:$0xff]
      %v744 = vld [vmem:[#allocation8 + $0x80] sm:$0xff]
      %v745 = vld [vmem:[#allocation8 + $0x88] sm:$0xff]
      %v746 = vld [vmem:[#allocation8 + $0x90] sm:$0xff]
      %v747 = vld [vmem:[#allocation8 + $0x98] sm:$0xff]
      %v748 = vld [vmem:[#allocation8 + $0xa0] sm:$0xff]
      %v749 = vld [vmem:[#allocation8 + $0xa8] sm:$0xff]
      %v750 = vld [vmem:[#allocation8 + $0xb0] sm:$0xff]
      %v751 = vld [vmem:[#allocation8 + $0xb8] sm:$0xff]
      %v752 = vld [vmem:[#allocation8 + $0xc0] sm:$0xff]
      %v753 = vld [vmem:[#allocation8 + $0xc8] sm:$0xff]
      %v754 = vld [vmem:[#allocation8 + $0xd0] sm:$0xff]
      %v755 = vld [vmem:[#allocation8 + $0xd8] sm:$0xff]
      %v756 = vld [vmem:[#allocation8 + $0xe0] sm:$0xff]
      %v757 = vld [vmem:[#allocation8 + $0xe8] sm:$0xff]
      %v758 = vld [vmem:[#allocation8 + $0xf0] sm:$0xff]
      %v759 = vld [vmem:[#allocation8 + $0xf8] sm:$0xff]
      %v760 = vld [vmem:[%s3] sm:$0x1]
      %v762 = vlaneseq
      %v763 = vshrl.u32 %v762, 7
      %v764 = vsub.s32 0, %v763
      %v765 = vrot.slane %v760, %v764
      %767 = vmatprep.subr.mxu0 0.0
      %768 = vmatpush1.msra.mxu0 %v728
      %769 = vmatprep.subr.mxu0 0.0
      %770 = vmatpush1.msra.mxu0 %v729
      %771 = vmatprep.subr.mxu0 0.0
      %772 = vmatpush1.msra.mxu0 %v730
      %773 = vmatprep.subr.mxu0 0.0
      %774 = vmatpush1.msra.mxu0 %v731
      %775 = vmatprep.subr.mxu0 0.0
      %776 = vmatpush1.msra.mxu0 %v732
      %777 = vmatprep.subr.mxu0 0.0
      %778 = vmatpush1.msra.mxu0 %v733
      %779 = vmatprep.subr.mxu0 0.0
      %780 = vmatpush1.msra.mxu0 %v734
      %781 = vmatprep.subr.mxu0 0.0
      %782 = vmatpush1.msra.mxu0 %v735
      %783 = vmatprep.subr.mxu0 0.0
      %784 = vmatpush1.msra.mxu0 %v736
      %785 = vmatprep.subr.mxu0 0.0
      %786 = vmatpush1.msra.mxu0 %v737
      %787 = vmatprep.subr.mxu0 0.0
      %788 = vmatpush1.msra.mxu0 %v738
      %789 = vmatprep.subr.mxu0 0.0
      %790 = vmatpush1.msra.mxu0 %v739
      %791 = vmatprep.subr.mxu0 0.0
      %792 = vmatpush1.msra.mxu0 %v740
      %793 = vmatprep.subr.mxu0 0.0
      %794 = vmatpush1.msra.mxu0 %v741
      %795 = vmatprep.subr.mxu0 0.0
      %796 = vmatpush1.msra.mxu0 %v742
      %797 = vmatprep.subr.mxu0 0.0
      %798 = vmatpush1.msra.mxu0 %v743
      %799 = vmatprep.subr.mxu0 0.0
      %800 = vmatpush1.msra.mxu0 %v744
      %801 = vmatprep.subr.mxu0 0.0
      %802 = vmatpush1.msra.mxu0 %v745
      %803 = vmatprep.subr.mxu0 0.0
      %804 = vmatpush1.msra.mxu0 %v746
      %805 = vmatprep.subr.mxu0 0.0
      %806 = vmatpush1.msra.mxu0 %v747
      %807 = vmatprep.subr.mxu0 0.0
      %808 = vmatpush1.msra.mxu0 %v748
      %809 = vmatprep.subr.mxu0 0.0
      %810 = vmatpush1.msra.mxu0 %v749
      %811 = vmatprep.subr.mxu0 0.0
      %812 = vmatpush1.msra.mxu0 %v750
      %813 = vmatprep.subr.mxu0 0.0
      %814 = vmatpush1.msra.mxu0 %v751
      %815 = vmatprep.subr.mxu0 0.0
      %816 = vmatpush1.msra.mxu0 %v752
      %817 = vmatprep.subr.mxu0 0.0
      %818 = vmatpush1.msra.mxu0 %v753
      %819 = vmatprep.subr.mxu0 0.0
      %820 = vmatpush1.msra.mxu0 %v754
      %821 = vmatprep.subr.mxu0 0.0
      %822 = vmatpush1.msra.mxu0 %v755
      %823 = vmatprep.subr.mxu0 0.0
      %824 = vmatpush1.msra.mxu0 %v756
      %825 = vmatprep.subr.mxu0 0.0
      %826 = vmatpush1.msra.mxu0 %v757
      %827 = vmatprep.subr.mxu0 0.0
      %828 = vmatpush1.msra.mxu0 %v758
      %829 = vmatprep.subr.mxu0 0.0
      %830 = vmatpush1.msra.mxu0 %v759
      %831 = vmatprep.mubr.f32.mxu0 %v665
      %832 = vmatmul.mubr.f32.gmra.mrb[0].mxu0 %v664
      %v833 = vpop.f32.mrb[0].mxu0
      %v834 = vadd.f32 %v765, %v833
      %v835 = vpop.f32.mrb[0].mxu0
      %836 = vmatprep.mubr.f32.mxu0 %v667
      %837 = vmatmul.mubr.f32.gmra.mrb[0].mxu0 %v666
      %v838 = vpop.f32.mrb[0].mxu0
      %v839 = vadd.f32 %v765, %v838
      %v840 = vpop.f32.mrb[0].mxu0
      %841 = vmatprep.mubr.f32.mxu0 %v669
      %842 = vmatmul.mubr.f32.gmra.mrb[0].mxu0 %v668
      %v843 = vpop.f32.mrb[0].mxu0
      %v844 = vadd.f32 %v765, %v843
      %v845 = vpop.f32.mrb[0].mxu0
      %846 = vmatprep.mubr.f32.mxu0 %v671
      %847 = vmatmul.mubr.f32.gmra.mrb[0].mxu0 %v670
      %v848 = vpop.f32.mrb[0].mxu0
      %v849 = vadd.f32 %v765, %v848
      %v850 = vpop.f32.mrb[0].mxu0
      %851 = vmatprep.mubr.f32.mxu0 %v673
      %852 = vmatmul.mubr.f32.gmra.mrb[0].mxu0 %v672
      %v853 = vpop.f32.mrb[0].mxu0
      %v854 = vadd.f32 %v765, %v853
      %v855 = vpop.f32.mrb[0].mxu0
      %856 = vmatprep.mubr.f32.mxu0 %v675
      %857 = vmatmul.mubr.f32.gmra.mrb[0].mxu0 %v674
      %v858 = vpop.f32.mrb[0].mxu0
      %v859 = vadd.f32 %v765, %v858
      %v860 = vpop.f32.mrb[0].mxu0
      %861 = vmatprep.mubr.f32.mxu0 %v677
      %862 = vmatmul.mubr.f32.gmra.mrb[0].mxu0 %v676
      %v863 = vpop.f32.mrb[0].mxu0
      %v864 = vadd.f32 %v765, %v863
      %v865 = vpop.f32.mrb[0].mxu0
      %866 = vmatprep.mubr.f32.mxu0 %v679
      %867 = vmatmul.mubr.f32.gmra.mrb[0].mxu0 %v678
      %v868 = vpop.f32.mrb[0].mxu0
      %v869 = vadd.f32 %v765, %v868
      %v870 = vpop.f32.mrb[0].mxu0
      %871 = vmatprep.mubr.f32.mxu0 %v681
      %872 = vmatmul.mubr.f32.gmra.mrb[0].mxu0 %v680
      %v873 = vpop.f32.mrb[0].mxu0
      %v874 = vadd.f32 %v765, %v873
      %v875 = vpop.f32.mrb[0].mxu0
      %876 = vmatprep.mubr.f32.mxu0 %v683
      %877 = vmatmul.mubr.f32.gmra.mrb[0].mxu0 %v682
      %v878 = vpop.f32.mrb[0].mxu0
      %v879 = vadd.f32 %v765, %v878
      %v880 = vpop.f32.mrb[0].mxu0
      %881 = vmatprep.mubr.f32.mxu0 %v685
      %882 = vmatmul.mubr.f32.gmra.mrb[0].mxu0 %v684
      %v883 = vpop.f32.mrb[0].mxu0
      %v884 = vadd.f32 %v765, %v883
      %v885 = vpop.f32.mrb[0].mxu0
      %886 = vmatprep.mubr.f32.mxu0 %v687
      %887 = vmatmul.mubr.f32.gmra.mrb[0].mxu0 %v686
      %v888 = vpop.f32.mrb[0].mxu0
      %v889 = vadd.f32 %v765, %v888
      %v890 = vpop.f32.mrb[0].mxu0
      %891 = vmatprep.mubr.f32.mxu0 %v689
      %892 = vmatmul.mubr.f32.gmra.mrb[0].mxu0 %v688
      %v893 = vpop.f32.mrb[0].mxu0
      %v894 = vadd.f32 %v765, %v893
      %v895 = vpop.f32.mrb[0].mxu0
      %896 = vmatprep.mubr.f32.mxu0 %v691
      %897 = vmatmul.mubr.f32.gmra.mrb[0].mxu0 %v690
      %v898 = vpop.f32.mrb[0].mxu0
      %v899 = vadd.f32 %v765, %v898
      %v900 = vpop.f32.mrb[0].mxu0
      %901 = vmatprep.mubr.f32.mxu0 %v693
      %902 = vmatmul.mubr.f32.gmra.mrb[0].mxu0 %v692
      %v903 = vpop.f32.mrb[0].mxu0
      %v904 = vadd.f32 %v765, %v903
      %v905 = vpop.f32.mrb[0].mxu0
      %906 = vmatprep.mubr.f32.mxu0 %v695
      %907 = vmatmul.mubr.f32.gmra.mrb[0].mxu0 %v694
      %v908 = vpop.f32.mrb[0].mxu0
      %v909 = vadd.f32 %v765, %v908
      %v910 = vpop.f32.mrb[0].mxu0
      %911 = vmatprep.mubr.f32.mxu0 %v697
      %912 = vmatmul.mubr.f32.gmra.mrb[0].mxu0 %v696
      %v913 = vpop.f32.mrb[0].mxu0
      %v914 = vadd.f32 %v765, %v913
      %v915 = vpop.f32.mrb[0].mxu0
      %916 = vmatprep.mubr.f32.mxu0 %v699
      %917 = vmatmul.mubr.f32.gmra.mrb[0].mxu0 %v698
      %v918 = vpop.f32.mrb[0].mxu0
      %v919 = vadd.f32 %v765, %v918
      %v920 = vpop.f32.mrb[0].mxu0
      %921 = vmatprep.mubr.f32.mxu0 %v701
      %922 = vmatmul.mubr.f32.gmra.mrb[0].mxu0 %v700
      %v923 = vpop.f32.mrb[0].mxu0
      %v924 = vadd.f32 %v765, %v923
      %v925 = vpop.f32.mrb[0].mxu0
      %926 = vmatprep.mubr.f32.mxu0 %v703
      %927 = vmatmul.mubr.f32.gmra.mrb[0].mxu0 %v702
      %v928 = vpop.f32.mrb[0].mxu0
      %v929 = vadd.f32 %v765, %v928
      %v930 = vpop.f32.mrb[0].mxu0
      %931 = vmatprep.mubr.f32.mxu0 %v705
      %932 = vmatmul.mubr.f32.gmra.mrb[0].mxu0 %v704
      %v933 = vpop.f32.mrb[0].mxu0
      %v934 = vadd.f32 %v765, %v933
      %v935 = vpop.f32.mrb[0].mxu0
      %936 = vmatprep.mubr.f32.mxu0 %v707
      %937 = vmatmul.mubr.f32.gmra.mrb[0].mxu0 %v706
      %v938 = vpop.f32.mrb[0].mxu0
      %v939 = vadd.f32 %v765, %v938
      %v940 = vpop.f32.mrb[0].mxu0
      %941 = vmatprep.mubr.f32.mxu0 %v709
      %942 = vmatmul.mubr.f32.gmra.mrb[0].mxu0 %v708
      %v943 = vpop.f32.mrb[0].mxu0
      %v944 = vadd.f32 %v765, %v943
      %v945 = vpop.f32.mrb[0].mxu0
      %946 = vmatprep.mubr.f32.mxu0 %v711
      %947 = vmatmul.mubr.f32.gmra.mrb[0].mxu0 %v710
      %v948 = vpop.f32.mrb[0].mxu0
      %v949 = vadd.f32 %v765, %v948
      %v950 = vpop.f32.mrb[0].mxu0
      %951 = vmatprep.mubr.f32.mxu0 %v713
      %952 = vmatmul.mubr.f32.gmra.mrb[0].mxu0 %v712
      %v953 = vpop.f32.mrb[0].mxu0
      %v954 = vadd.f32 %v765, %v953
      %v955 = vpop.f32.mrb[0].mxu0
      %956 = vmatprep.mubr.f32.mxu0 %v715
      %957 = vmatmul.mubr.f32.gmra.mrb[0].mxu0 %v714
      %v958 = vpop.f32.mrb[0].mxu0
      %v959 = vadd.f32 %v765, %v958
      %v960 = vpop.f32.mrb[0].mxu0
      %961 = vmatprep.mubr.f32.mxu0 %v717
      %962 = vmatmul.mubr.f32.gmra.mrb[0].mxu0 %v716
      %v963 = vpop.f32.mrb[0].mxu0
      %v964 = vadd.f32 %v765, %v963
      %v965 = vpop.f32.mrb[0].mxu0
      %966 = vmatprep.mubr.f32.mxu0 %v719
      %967 = vmatmul.mubr.f32.gmra.mrb[0].mxu0 %v718
      %v968 = vpop.f32.mrb[0].mxu0
      %v969 = vadd.f32 %v765, %v968
      %v970 = vpop.f32.mrb[0].mxu0
      %971 = vmatprep.mubr.f32.mxu0 %v721
      %972 = vmatmul.mubr.f32.gmra.mrb[0].mxu0 %v720
      %v973 = vpop.f32.mrb[0].mxu0
      %v974 = vadd.f32 %v765, %v973
      %v975 = vpop.f32.mrb[0].mxu0
      %976 = vmatprep.mubr.f32.mxu0 %v723
      %977 = vmatmul.mubr.f32.gmra.mrb[0].mxu0 %v722
      %v978 = vpop.f32.mrb[0].mxu0
      %v979 = vadd.f32 %v765, %v978
      %v980 = vpop.f32.mrb[0].mxu0
      %981 = vmatprep.mubr.f32.mxu0 %v725
      %982 = vmatmul.mubr.f32.gmra.mrb[0].mxu0 %v724
      %v983 = vpop.f32.mrb[0].mxu0
      %v984 = vadd.f32 %v765, %v983
      %v985 = vpop.f32.mrb[0].mxu0
      %986 = vmatprep.mubr.f32.mxu0 %v727
      %987 = vmatmul.mubr.f32.gmra.mrb[0].mxu0 %v726
      %v988 = vpop.f32.mrb[0].mxu0
      %v989 = vadd.f32 %v765, %v988
      %v990 = vpop.f32.mrb[0].mxu0
      %991 = vdwg.mxu0
      %v992 = vmax.f32 %v834, 0.0
      %v993 = vmax.f32 %v839, 0.0
      %v994 = vmax.f32 %v844, 0.0
      %v995 = vmax.f32 %v849, 0.0
      %v996 = vmax.f32 %v854, 0.0
      %v997 = vmax.f32 %v859, 0.0
      %v998 = vmax.f32 %v864, 0.0
      %v999 = vmax.f32 %v869, 0.0
      %v1000 = vmax.f32 %v874, 0.0
      %v1001 = vmax.f32 %v879, 0.0
      %v1002 = vmax.f32 %v884, 0.0
      %v1003 = vmax.f32 %v889, 0.0
      %v1004 = vmax.f32 %v894, 0.0
      %v1005 = vmax.f32 %v899, 0.0
      %v1006 = vmax.f32 %v904, 0.0
      %v1007 = vmax.f32 %v909, 0.0
      %v1008 = vmax.f32 %v914, 0.0
      %v1009 = vmax.f32 %v919, 0.0
      %v1010 = vmax.f32 %v924, 0.0
      %v1011 = vmax.f32 %v929, 0.0
      %v1012 = vmax.f32 %v934, 0.0
      %v1013 = vmax.f32 %v939, 0.0
      %v1014 = vmax.f32 %v944, 0.0
      %v1015 = vmax.f32 %v949, 0.0
      %v1016 = vmax.f32 %v954, 0.0
      %v1017 = vmax.f32 %v959, 0.0
      %v1018 = vmax.f32 %v964, 0.0
      %v1019 = vmax.f32 %v969, 0.0
      %v1020 = vmax.f32 %v974, 0.0
      %v1021 = vmax.f32 %v979, 0.0
      %v1022 = vmax.f32 %v984, 0.0
      %v1023 = vmax.f32 %v989, 0.0
      %1024 = vst [vmem:[#allocation9] sm:$0xff] %v992
      %1025 = vst [vmem:[#allocation9 + $0x8] sm:$0xff] %v993
      %1026 = vst [vmem:[#allocation9 + $0x10] sm:$0xff] %v994
      %1027 = vst [vmem:[#allocation9 + $0x18] sm:$0xff] %v995
      %1028 = vst [vmem:[#allocation9 + $0x20] sm:$0xff] %v996
      %1029 = vst [vmem:[#allocation9 + $0x28] sm:$0xff] %v997
      %1030 = vst [vmem:[#allocation9 + $0x30] sm:$0xff] %v998
      %1031 = vst [vmem:[#allocation9 + $0x38] sm:$0xff] %v999
      %1032 = vst [vmem:[#allocation9 + $0x40] sm:$0xff] %v1000
      %1033 = vst [vmem:[#allocation9 + $0x48] sm:$0xff] %v1001
      %1034 = vst [vmem:[#allocation9 + $0x50] sm:$0xff] %v1002
      %1035 = vst [vmem:[#allocation9 + $0x58] sm:$0xff] %v1003
      %1036 = vst [vmem:[#allocation9 + $0x60] sm:$0xff] %v1004
      %1037 = vst [vmem:[#allocation9 + $0x68] sm:$0xff] %v1005
      %1038 = vst [vmem:[#allocation9 + $0x70] sm:$0xff] %v1006
      %1039 = vst [vmem:[#allocation9 + $0x78] sm:$0xff] %v1007
      %1040 = vst [vmem:[#allocation9 + $0x80] sm:$0xff] %v1008
      %1041 = vst [vmem:[#allocation9 + $0x88] sm:$0xff] %v1009
      %1042 = vst [vmem:[#allocation9 + $0x90] sm:$0xff] %v1010
      %1043 = vst [vmem:[#allocation9 + $0x98] sm:$0xff] %v1011
      %1044 = vst [vmem:[#allocation9 + $0xa0] sm:$0xff] %v1012
      %1045 = vst [vmem:[#allocation9 + $0xa8] sm:$0xff] %v1013
      %1046 = vst [vmem:[#allocation9 + $0xb0] sm:$0xff] %v1014
      %1047 = vst [vmem:[#allocation9 + $0xb8] sm:$0xff] %v1015
      %1048 = vst [vmem:[#allocation9 + $0xc0] sm:$0xff] %v1016
      %1049 = vst [vmem:[#allocation9 + $0xc8] sm:$0xff] %v1017
      %1050 = vst [vmem:[#allocation9 + $0xd0] sm:$0xff] %v1018
      %1051 = vst [vmem:[#allocation9 + $0xd8] sm:$0xff] %v1019
      %1052 = vst [vmem:[#allocation9 + $0xe0] sm:$0xff] %v1020
      %1053 = vst [vmem:[#allocation9 + $0xe8] sm:$0xff] %v1021
      %1054 = vst [vmem:[#allocation9 + $0xf0] sm:$0xff] %v1022
      %1055 = vst [vmem:[#allocation9 + $0xf8] sm:$0xff] %v1023
    $region37: #{tpu_custom_call.1} parent=1 // pred_fallthru
      _
    // Predicated region
    $region38: #{tpu_custom_call.1} parent=1 // pred_check
      _
    $region39: #{tpu_custom_call.1} parent=1 // pred_check_branch
      %1057 = sbr.rel (0) target = $region41
    $region40: #{tpu_custom_call.1} parent=1 // pred_region
      %s1059 = ssub.s32 4096, 4096
      %1060 = vsyncadd [#allocation5], %s1059
      %s1061 = sshll.u32 [#allocation9], 4
      %s1062 = int_to_ptr.vmem [resolvable:$true] %s1061
      %1067 = dma.vmem_to_hbm [thread:$0]  %s1062, 4096, %s4, [#allocation5], 128, 128, 8
    $region41: #{tpu_custom_call.1} parent=1 // pred_fallthru
      _
    // Predicated region
    $region42: #{tpu_custom_call.1} parent=1 // pred_check
      _
    $region43: #{tpu_custom_call.1} parent=1 // pred_check_branch
      %1069 = sbr.rel (0) target = $region45
    $region44: #{tpu_custom_call.1} parent=1 // pred_region
      %1070 = dma.done [#allocation5], 4096
    $region45: #{tpu_custom_call.1} parent=1 // pred_fallthru
      _
    %1071 = vsyncpa [#allocation4], 1
    %1072 = vsyncpa [#allocation7], 1
    %1073 = vsyncpa [#allocation5], 1

</llo_original>
